<compile_context>
chip_gen: v5e
topology: v5e:2x2
jax: 0.10.0
libtpu: 0.0.40
codegen_flags: <defaults>
</compile_context>

<pallas_src>
import functools

import jax
import jax.numpy as jnp
from jax.experimental import pallas as pl
from jax.experimental.pallas import tpu as pltpu


def _round_up(x, m):
    return (x + m - 1) // m * m


def vae_kernel(x_ref, eps_ref,
               w1_ref, b1_ref,
               w2m_ref, b2m_ref, w2v_ref, b2v_ref,
               w3_ref, b3_ref, w4_ref, b4_ref,
               recon_ref, mu_ref, logvar_ref):
    mm_dtype = w1_ref.dtype  # matmul dtype (f32 or bf16); accumulation is always f32

    x = x_ref[...].astype(mm_dtype)

    # ----- encoder -----
    h1 = jnp.dot(x, w1_ref[...], preferred_element_type=jnp.float32) + b1_ref[...]
    h1 = jnp.maximum(h1, 0.0).astype(mm_dtype)                     # ReLU

    # split head: mu / log_var produced directly (no lane slicing of a fused result)
    mu = jnp.dot(h1, w2m_ref[...], preferred_element_type=jnp.float32) + b2m_ref[...]
    log_var = jnp.dot(h1, w2v_ref[...], preferred_element_type=jnp.float32) + b2v_ref[...]

    # ----- reparameterize (f32 elementwise) -----
    z = mu + eps_ref[...] * jnp.exp(0.5 * log_var)

    # ----- decoder -----
    h2 = jnp.dot(z.astype(mm_dtype), w3_ref[...],
                 preferred_element_type=jnp.float32) + b3_ref[...]
    h2 = jnp.maximum(h2, 0.0).astype(mm_dtype)                     # ReLU
    dec = jnp.dot(h2, w4_ref[...], preferred_element_type=jnp.float32) + b4_ref[...]

    recon_ref[...] = jax.nn.sigmoid(dec)
    mu_ref[...] = mu
    logvar_ref[...] = log_var


def prepare_params(params, matmul_dtype=jnp.float32):
    """One-time prep (hoisted out of the forward): split the encoder head into
    mu / log_var halves and cast weights to the matmul dtype.  Biases stay f32."""
    w1, b1, w2, b2, w3, b3, w4, b4 = params
    L = w2.shape[-1] // 2
    w2m, w2v = w2[:, :L], w2[:, L:]
    b2m, b2v = b2[:, :L], b2[:, L:]
    c = lambda w: w.astype(matmul_dtype)
    return (c(w1), b1, c(w2m), b2m, c(w2v), b2v, c(w3), b3, c(w4), b4)


@functools.partial(jax.jit, static_argnames=("bm",))
def vae_forward(x, eps, prep_params, *, bm=1024):
    """VAE forward. x: [B, D_in] f32, eps: [B, L] f32, prep_params from prepare_params.

    bm: batch tile (primary tuning knob).  512-2048 amortizes per-step overhead;
    the per-step working set is sized explicitly below and stays well under VMEM
    on all of v5e / v6e / v7x at the default.
    """
    w1, b1, w2m, b2m, w2v, b2v, w3, b3, w4, b4 = prep_params
    B, D_in = x.shape
    L = eps.shape[-1]
    H = w1.shape[-1]

    # ---- batch tiling (only the batch axis is ever padded) ----
    B8 = _round_up(B, 8)
    bm_eff = min(_round_up(bm, 8), B8)
    # Prefer >= 2 grid steps when the batch is large enough (each step >= 128 rows):
    # enables pipelined DMA/compute overlap and lets v7x shard the parallel axis
    # across its two TensorCores.
    if B8 >= 256 and bm_eff >= B8:
        bm_eff = _round_up(pl.cdiv(B8, 2), 8)
    Bp = _round_up(B8, bm_eff)
    grid = (Bp // bm_eff,)

    if Bp != B:
        x = jnp.pad(x, ((0, Bp - B), (0, 0)))
        eps = jnp.pad(eps, ((0, Bp - B), (0, 0)))

    # ---- explicit scoped-VMEM budget for this tile size ----
    mm_itemsize = jnp.dtype(w1.dtype).itemsize
    io_bytes = bm_eff * (2 * D_in + 3 * L) * 4                 # x, eps, recon, mu, logvar
    w_bytes = sum(int(a.size) * jnp.dtype(a.dtype).itemsize for a in prep_params)
    tmp_bytes = bm_eff * 2 * H * (4 + mm_itemsize)             # h1/h2 f32 (+ bf16 copies)
    vmem_limit = 2 * io_bytes + 2 * w_bytes + 2 * tmp_bytes + (8 << 20)
    vmem_limit = int(min(max(vmem_limit, 32 << 20), 64 << 20))  # v5e-default .. v7x-physical

    # batch-tiled activations; weights/biases resident (constant block index, so the
    # pipeline fetches them once -- at H=256 their footprint is ~180 KiB, negligible)
    def act_spec(feat):
        return pl.BlockSpec((bm_eff, feat), lambda i: (i, 0))

    def const_spec(shape):
        return pl.BlockSpec(shape, lambda i: (0,) * len(shape))

    in_specs = [
        act_spec(D_in),                 # x
        act_spec(L),                    # eps
        const_spec(w1.shape), const_spec(b1.shape),
        const_spec(w2m.shape), const_spec(b2m.shape),
        const_spec(w2v.shape), const_spec(b2v.shape),
        const_spec(w3.shape), const_spec(b3.shape),
        const_spec(w4.shape), const_spec(b4.shape),
    ]
    out_specs = [
        act_spec(D_in),                 # recon
        act_spec(L),                    # mu
        act_spec(L),                    # log_var
    ]
    out_shape = (
        jax.ShapeDtypeStruct((Bp, D_in), jnp.float32),
        jax.ShapeDtypeStruct((Bp, L), jnp.float32),
        jax.ShapeDtypeStruct((Bp, L), jnp.float32),
    )

    recon_p, mu_p, logvar_p = pl.pallas_call(
        vae_kernel,
        out_shape=out_shape,
        grid_spec=pltpu.PrefetchScalarGridSpec(
            num_scalar_prefetch=0,
            grid=grid,
            in_specs=in_specs,
            out_specs=out_specs,
        ),
        compiler_params=pltpu.CompilerParams(
            dimension_semantics=("parallel",),
            vmem_limit_bytes=vmem_limit,
        ),
    )(x, eps, w1, b1, w2m, b2m, w2v, b2v, w3, b3, w4, b4)

    if Bp != B:
        recon_p, mu_p, logvar_p = recon_p[:B], mu_p[:B], logvar_p[:B]
    return recon_p, mu_p, logvar_p


def init_params(key, input_dim, latent_dim, hidden=256):
    """Deterministic nn.Linear-style init; weights as [in, out], biases as [1, out]."""
    def linear(key, fan_in, fan_out):
        kw, kb = jax.random.split(key)
        bound = 1.0 / jnp.sqrt(fan_in)
        w = jax.random.uniform(kw, (fan_in, fan_out), jnp.float32, -bound, bound)
        b = jax.random.uniform(kb, (1, fan_out), jnp.float32, -bound, bound)
        return w, b

    k1, k2, k3, k4 = jax.random.split(key, 4)
    w1, b1 = linear(k1, input_dim, hidden)           # encoder layer 1
    w2, b2 = linear(k2, hidden, latent_dim * 2)      # encoder layer 2 -> [mu | log_var]
    w3, b3 = linear(k3, latent_dim, hidden)          # decoder layer 1
    w4, b4 = linear(k4, hidden, input_dim)           # decoder layer 2
    return (w1, b1, w2, b2, w3, b3, w4, b4)


def vae_forward_ref(x, eps, params):
    """Pure-JAX reference (matches the PyTorch module's forward)."""
    w1, b1, w2, b2, w3, b3, w4, b4 = params
    h1 = jnp.maximum(x @ w1 + b1, 0.0)
    enc = h1 @ w2 + b2
    L = eps.shape[-1]
    mu, log_var = enc[:, :L], enc[:, L:]
    z = mu + eps * jnp.exp(0.5 * log_var)
    h2 = jnp.maximum(z @ w3 + b3, 0.0)
    recon = jax.nn.sigmoid(h2 @ w4 + b4)
    return recon, mu, log_var


if __name__ == "__main__":
    input_dim = 64
    latent_dim = 16

    key = jax.random.PRNGKey(0)
    k_params, k_x, k_eps = jax.random.split(key, 3)
    params = init_params(k_params, input_dim, latent_dim)

    # one-time weight prep (hoisted out of the per-call forward)
    prep_f32 = prepare_params(params, jnp.float32)
    prep_bf16 = prepare_params(params, jnp.bfloat16)   # v6e/v7x fast path

    # --- small-batch f32 check (single grid step) ---
    batch = 8
    x = jax.random.uniform(k_x, (batch, input_dim), jnp.float32)
    eps = jax.random.normal(k_eps, (batch, latent_dim), jnp.float32)

    recon, mu, log_var = vae_forward(x, eps, prep_f32)
    jax.block_until_ready((recon, mu, log_var))
    r_ref, m_ref, lv_ref = vae_forward_ref(x, eps, params)
    assert recon.shape == (batch, input_dim)
    assert mu.shape == (batch, latent_dim) and log_var.shape == (batch, latent_dim)
    assert jnp.allclose(recon, r_ref, atol=1e-5)
    assert jnp.allclose(mu, m_ref, atol=1e-5)
    assert jnp.allclose(log_var, lv_ref, atol=1e-5)

    # --- larger batch: forced >= 2 parallel grid steps (v7x megacore-shardable) ---
    batch2 = 512
    x2 = jax.random.uniform(k_x, (batch2, input_dim), jnp.float32)
    eps2 = jax.random.normal(k_eps, (batch2, latent_dim), jnp.float32)
    recon2, mu2, lv2 = vae_forward(x2, eps2, prep_f32)
    jax.block_until_ready((recon2, mu2, lv2))
    r2_ref, m2_ref, lv2_ref = vae_forward_ref(x2, eps2, params)
    assert jnp.allclose(recon2, r2_ref, atol=1e-5)
    assert jnp.allclose(mu2, m2_ref, atol=1e-5)
    assert jnp.allclose(lv2, lv2_ref, atol=1e-5)

    # --- bf16 matmul path (v6e/v7x); f32 accumulation, looser tolerance ---
    recon3, mu3, lv3 = vae_forward(x2, eps2, prep_bf16)
    jax.block_until_ready((recon3, mu3, lv3))
    assert jnp.allclose(recon3, r2_ref, atol=5e-2, rtol=5e-2)
    assert jnp.allclose(mu3, m2_ref, atol=5e-2, rtol=5e-2)
    assert jnp.allclose(lv3, lv2_ref, atol=5e-2, rtol=5e-2)

    print("KERNEL_OK")
</pallas_src>

<mosaic_0001>
module attributes {stable_mosaic.version = 11 : i64} {
  func.func @vae_kernel(%arg0: i32, %arg1: memref<8x64xf32, #tpu.memory_space<vmem>>, %arg2: memref<8x16xf32, #tpu.memory_space<vmem>>, %arg3: memref<64x256xf32, #tpu.memory_space<vmem>>, %arg4: memref<1x256xf32, #tpu.memory_space<vmem>>, %arg5: memref<256x16xf32, #tpu.memory_space<vmem>>, %arg6: memref<1x16xf32, #tpu.memory_space<vmem>>, %arg7: memref<256x16xf32, #tpu.memory_space<vmem>>, %arg8: memref<1x16xf32, #tpu.memory_space<vmem>>, %arg9: memref<16x256xf32, #tpu.memory_space<vmem>>, %arg10: memref<1x256xf32, #tpu.memory_space<vmem>>, %arg11: memref<256x64xf32, #tpu.memory_space<vmem>>, %arg12: memref<1x64xf32, #tpu.memory_space<vmem>>, %arg13: memref<8x64xf32, #tpu.memory_space<vmem>>, %arg14: memref<8x16xf32, #tpu.memory_space<vmem>>, %arg15: memref<8x16xf32, #tpu.memory_space<vmem>>) attributes {dimension_semantics = [#tpu.dimension_semantics<parallel>], iteration_bounds = array<i64: 1>, scalar_prefetch = 0 : i64, scratch_operands = 0 : i64, tpu.core_type = #tpu.core_type<tc>, window_params = [{transform_indices = @transform_0, window_bounds = array<i64: 8, 64>}, {transform_indices = @transform_1, window_bounds = array<i64: 8, 16>}, {pipeline_mode = #tpu.pipeline_mode<synchronous>, transform_indices = @transform_2, window_bounds = array<i64: 64, 256>}, {pipeline_mode = #tpu.pipeline_mode<synchronous>, transform_indices = @transform_3, window_bounds = array<i64: 1, 256>}, {pipeline_mode = #tpu.pipeline_mode<synchronous>, transform_indices = @transform_4, window_bounds = array<i64: 256, 16>}, {pipeline_mode = #tpu.pipeline_mode<synchronous>, transform_indices = @transform_5, window_bounds = array<i64: 1, 16>}, {pipeline_mode = #tpu.pipeline_mode<synchronous>, transform_indices = @transform_6, window_bounds = array<i64: 256, 16>}, {pipeline_mode = #tpu.pipeline_mode<synchronous>, transform_indices = @transform_7, window_bounds = array<i64: 1, 16>}, {pipeline_mode = #tpu.pipeline_mode<synchronous>, transform_indices = @transform_8, window_bounds = array<i64: 16, 256>}, {pipeline_mode = #tpu.pipeline_mode<synchronous>, transform_indices = @transform_9, window_bounds = array<i64: 1, 256>}, {pipeline_mode = #tpu.pipeline_mode<synchronous>, transform_indices = @transform_10, window_bounds = array<i64: 256, 64>}, {pipeline_mode = #tpu.pipeline_mode<synchronous>, transform_indices = @transform_11, window_bounds = array<i64: 1, 64>}, {transform_indices = @transform_12, window_bounds = array<i64: 8, 64>}, {transform_indices = @transform_13, window_bounds = array<i64: 8, 16>}, {transform_indices = @transform_14, window_bounds = array<i64: 8, 16>}]} {
    %c0 = arith.constant 0 : index
    %c0_0 = arith.constant 0 : index
    %0 = vector.load %arg1[%c0, %c0_0] : memref<8x64xf32, #tpu.memory_space<vmem>>, vector<8x64xf32>
    %c0_1 = arith.constant 0 : index
    %c0_2 = arith.constant 0 : index
    %1 = vector.load %arg3[%c0_1, %c0_2] : memref<64x256xf32, #tpu.memory_space<vmem>>, vector<64x256xf32>
    %cst = arith.constant dense<0.000000e+00> : vector<8x256xf32>
    %2 = tpu.matmul %0, %1, %cst {dimension_numbers = #tpu.dot_dimension_numbers<[1], [0], [0], [1], [0, 0, 1, 1], [], []>} : vector<8x64xf32>, vector<64x256xf32>, vector<8x256xf32> -> vector<8x256xf32>
    %c0_3 = arith.constant 0 : index
    %c0_4 = arith.constant 0 : index
    %3 = vector.load %arg4[%c0_3, %c0_4] : memref<1x256xf32, #tpu.memory_space<vmem>>, vector<1x256xf32>
    %4 = vector.broadcast %3 : vector<1x256xf32> to vector<8x256xf32>
    %5 = arith.addf %2, %4 : vector<8x256xf32>
    %cst_5 = arith.constant 0.000000e+00 : f32
    %6 = vector.broadcast %cst_5 : f32 to vector<8x256xf32>
    %7 = arith.maximumf %5, %6 : vector<8x256xf32>
    %c0_6 = arith.constant 0 : index
    %c0_7 = arith.constant 0 : index
    %8 = vector.load %arg5[%c0_6, %c0_7] : memref<256x16xf32, #tpu.memory_space<vmem>>, vector<256x16xf32>
    %cst_8 = arith.constant dense<0.000000e+00> : vector<8x16xf32>
    %9 = tpu.matmul %7, %8, %cst_8 {dimension_numbers = #tpu.dot_dimension_numbers<[1], [0], [0], [1], [0, 0, 1, 1], [], []>} : vector<8x256xf32>, vector<256x16xf32>, vector<8x16xf32> -> vector<8x16xf32>
    %c0_9 = arith.constant 0 : index
    %c0_10 = arith.constant 0 : index
    %10 = vector.load %arg6[%c0_9, %c0_10] : memref<1x16xf32, #tpu.memory_space<vmem>>, vector<1x16xf32>
    %11 = vector.broadcast %10 : vector<1x16xf32> to vector<8x16xf32>
    %12 = arith.addf %9, %11 : vector<8x16xf32>
    %c0_11 = arith.constant 0 : index
    %c0_12 = arith.constant 0 : index
    %13 = vector.load %arg7[%c0_11, %c0_12] : memref<256x16xf32, #tpu.memory_space<vmem>>, vector<256x16xf32>
    %cst_13 = arith.constant dense<0.000000e+00> : vector<8x16xf32>
    %14 = tpu.matmul %7, %13, %cst_13 {dimension_numbers = #tpu.dot_dimension_numbers<[1], [0], [0], [1], [0, 0, 1, 1], [], []>} : vector<8x256xf32>, vector<256x16xf32>, vector<8x16xf32> -> vector<8x16xf32>
    %c0_14 = arith.constant 0 : index
    %c0_15 = arith.constant 0 : index
    %15 = vector.load %arg8[%c0_14, %c0_15] : memref<1x16xf32, #tpu.memory_space<vmem>>, vector<1x16xf32>
    %16 = vector.broadcast %15 : vector<1x16xf32> to vector<8x16xf32>
    %17 = arith.addf %14, %16 : vector<8x16xf32>
    %c0_16 = arith.constant 0 : index
    %c0_17 = arith.constant 0 : index
    %18 = vector.load %arg2[%c0_16, %c0_17] : memref<8x16xf32, #tpu.memory_space<vmem>>, vector<8x16xf32>
    %cst_18 = arith.constant 5.000000e-01 : f32
    %19 = vector.broadcast %cst_18 : f32 to vector<8x16xf32>
    %20 = arith.mulf %19, %17 : vector<8x16xf32>
    %21 = math.exp %20 : vector<8x16xf32>
    %22 = arith.mulf %18, %21 : vector<8x16xf32>
    %23 = arith.addf %12, %22 : vector<8x16xf32>
    %c0_19 = arith.constant 0 : index
    %c0_20 = arith.constant 0 : index
    %24 = vector.load %arg9[%c0_19, %c0_20] : memref<16x256xf32, #tpu.memory_space<vmem>>, vector<16x256xf32>
    %cst_21 = arith.constant dense<0.000000e+00> : vector<8x256xf32>
    %25 = tpu.matmul %23, %24, %cst_21 {dimension_numbers = #tpu.dot_dimension_numbers<[1], [0], [0], [1], [0, 0, 1, 1], [], []>} : vector<8x16xf32>, vector<16x256xf32>, vector<8x256xf32> -> vector<8x256xf32>
    %c0_22 = arith.constant 0 : index
    %c0_23 = arith.constant 0 : index
    %26 = vector.load %arg10[%c0_22, %c0_23] : memref<1x256xf32, #tpu.memory_space<vmem>>, vector<1x256xf32>
    %27 = vector.broadcast %26 : vector<1x256xf32> to vector<8x256xf32>
    %28 = arith.addf %25, %27 : vector<8x256xf32>
    %cst_24 = arith.constant 0.000000e+00 : f32
    %29 = vector.broadcast %cst_24 : f32 to vector<8x256xf32>
    %30 = arith.maximumf %28, %29 : vector<8x256xf32>
    %c0_25 = arith.constant 0 : index
    %c0_26 = arith.constant 0 : index
    %31 = vector.load %arg11[%c0_25, %c0_26] : memref<256x64xf32, #tpu.memory_space<vmem>>, vector<256x64xf32>
    %cst_27 = arith.constant dense<0.000000e+00> : vector<8x64xf32>
    %32 = tpu.matmul %30, %31, %cst_27 {dimension_numbers = #tpu.dot_dimension_numbers<[1], [0], [0], [1], [0, 0, 1, 1], [], []>} : vector<8x256xf32>, vector<256x64xf32>, vector<8x64xf32> -> vector<8x64xf32>
    %c0_28 = arith.constant 0 : index
    %c0_29 = arith.constant 0 : index
    %33 = vector.load %arg12[%c0_28, %c0_29] : memref<1x64xf32, #tpu.memory_space<vmem>>, vector<1x64xf32>
    %34 = vector.broadcast %33 : vector<1x64xf32> to vector<8x64xf32>
    %35 = arith.addf %32, %34 : vector<8x64xf32>
    %36 = arith.negf %35 : vector<8x64xf32>
    %37 = math.exp %36 : vector<8x64xf32>
    %cst_30 = arith.constant 1.000000e+00 : f32
    %38 = vector.broadcast %cst_30 : f32 to vector<8x64xf32>
    %39 = arith.addf %38, %37 : vector<8x64xf32>
    %40 = arith.divf %38, %39 : vector<8x64xf32>
    %c0_31 = arith.constant 0 : index
    %c0_32 = arith.constant 0 : index
    %41 = vector.load %arg13[%c0_31, %c0_32] : memref<8x64xf32, #tpu.memory_space<vmem>>, vector<8x64xf32>
    tpu.vector_store %arg13[%c0_31, %c0_32], %40 {strides = array<i32>} : memref<8x64xf32, #tpu.memory_space<vmem>>, vector<8x64xf32>,
    %c0_33 = arith.constant 0 : index
    %c0_34 = arith.constant 0 : index
    %42 = vector.load %arg14[%c0_33, %c0_34] : memref<8x16xf32, #tpu.memory_space<vmem>>, vector<8x16xf32>
    tpu.vector_store %arg14[%c0_33, %c0_34], %12 {strides = array<i32>} : memref<8x16xf32, #tpu.memory_space<vmem>>, vector<8x16xf32>,
    %c0_35 = arith.constant 0 : index
    %c0_36 = arith.constant 0 : index
    %43 = vector.load %arg15[%c0_35, %c0_36] : memref<8x16xf32, #tpu.memory_space<vmem>>, vector<8x16xf32>
    tpu.vector_store %arg15[%c0_35, %c0_36], %17 {strides = array<i32>} : memref<8x16xf32, #tpu.memory_space<vmem>>, vector<8x16xf32>,
    return
  }
  func.func @transform_0(%arg0: i32) -> (i32, i32) {
    %c0_i32 = arith.constant 0 : i32
    %c0_i32_0 = arith.constant 0 : i32
    return %arg0, %c0_i32 : i32, i32
  }
  func.func @transform_1(%arg0: i32) -> (i32, i32) {
    %c0_i32 = arith.constant 0 : i32
    %c0_i32_0 = arith.constant 0 : i32
    return %arg0, %c0_i32 : i32, i32
  }
  func.func @transform_2(%arg0: i32) -> (i32, i32) {
    %c0_i32 = arith.constant 0 : i32
    %c0_i32_0 = arith.constant 0 : i32
    %c0_i32_1 = arith.constant 0 : i32
    return %c0_i32, %c0_i32_0 : i32, i32
  }
  func.func @transform_3(%arg0: i32) -> (i32, i32) {
    %c0_i32 = arith.constant 0 : i32
    %c0_i32_0 = arith.constant 0 : i32
    %c0_i32_1 = arith.constant 0 : i32
    return %c0_i32, %c0_i32_0 : i32, i32
  }
  func.func @transform_4(%arg0: i32) -> (i32, i32) {
    %c0_i32 = arith.constant 0 : i32
    %c0_i32_0 = arith.constant 0 : i32
    %c0_i32_1 = arith.constant 0 : i32
    return %c0_i32, %c0_i32_0 : i32, i32
  }
  func.func @transform_5(%arg0: i32) -> (i32, i32) {
    %c0_i32 = arith.constant 0 : i32
    %c0_i32_0 = arith.constant 0 : i32
    %c0_i32_1 = arith.constant 0 : i32
    return %c0_i32, %c0_i32_0 : i32, i32
  }
  func.func @transform_6(%arg0: i32) -> (i32, i32) {
    %c0_i32 = arith.constant 0 : i32
    %c0_i32_0 = arith.constant 0 : i32
    %c0_i32_1 = arith.constant 0 : i32
    return %c0_i32, %c0_i32_0 : i32, i32
  }
  func.func @transform_7(%arg0: i32) -> (i32, i32) {
    %c0_i32 = arith.constant 0 : i32
    %c0_i32_0 = arith.constant 0 : i32
    %c0_i32_1 = arith.constant 0 : i32
    return %c0_i32, %c0_i32_0 : i32, i32
  }
  func.func @transform_8(%arg0: i32) -> (i32, i32) {
    %c0_i32 = arith.constant 0 : i32
    %c0_i32_0 = arith.constant 0 : i32
    %c0_i32_1 = arith.constant 0 : i32
    return %c0_i32, %c0_i32_0 : i32, i32
  }
  func.func @transform_9(%arg0: i32) -> (i32, i32) {
    %c0_i32 = arith.constant 0 : i32
    %c0_i32_0 = arith.constant 0 : i32
    %c0_i32_1 = arith.constant 0 : i32
    return %c0_i32, %c0_i32_0 : i32, i32
  }
  func.func @transform_10(%arg0: i32) -> (i32, i32) {
    %c0_i32 = arith.constant 0 : i32
    %c0_i32_0 = arith.constant 0 : i32
    %c0_i32_1 = arith.constant 0 : i32
    return %c0_i32, %c0_i32_0 : i32, i32
  }
  func.func @transform_11(%arg0: i32) -> (i32, i32) {
    %c0_i32 = arith.constant 0 : i32
    %c0_i32_0 = arith.constant 0 : i32
    %c0_i32_1 = arith.constant 0 : i32
    return %c0_i32, %c0_i32_0 : i32, i32
  }
  func.func @transform_12(%arg0: i32) -> (i32, i32) {
    %c0_i32 = arith.constant 0 : i32
    %c0_i32_0 = arith.constant 0 : i32
    return %arg0, %c0_i32 : i32, i32
  }
  func.func @transform_13(%arg0: i32) -> (i32, i32) {
    %c0_i32 = arith.constant 0 : i32
    %c0_i32_0 = arith.constant 0 : i32
    return %arg0, %c0_i32 : i32, i32
  }
  func.func @transform_14(%arg0: i32) -> (i32, i32) {
    %c0_i32 = arith.constant 0 : i32
    %c0_i32_0 = arith.constant 0 : i32
    return %arg0, %c0_i32 : i32, i32
  }
}

</mosaic_0001>

<llo_original>
// kernel: vae_forward.1
$region0: #{vae_forward.1}
  #allocation0 [shape = 'u32[]', space=smem, size = 0x4, offset = 0x4, fixed_abs, tag = 'smem constant byte address 0x4 - core index']
  #allocation1 [shape = 'u32[72,128]{1,0:T(1,128)}', space=vmem, size = 0x9000, scoped, tag = 'internal scratch']
  %s0 = inlined_call_operand.vmem [shape: f32[8,64], index: 0, kind: input, shape index: {}]
  %s1 = inlined_call_operand.vmem [shape: f32[8,16], index: 1, kind: input, shape index: {}]
  %s2 = inlined_call_operand.vmem [shape: f32[64,256], index: 2, kind: input, shape index: {}]
  %s3 = inlined_call_operand.vmem [shape: f32[1,256], index: 3, kind: input, shape index: {}]
  %s4 = inlined_call_operand.vmem [shape: f32[256,16], index: 4, kind: input, shape index: {}]
  %s5 = inlined_call_operand.vmem [shape: f32[1,16], index: 5, kind: input, shape index: {}]
  %s6 = inlined_call_operand.vmem [shape: f32[256,16], index: 6, kind: input, shape index: {}]
  %s7 = inlined_call_operand.vmem [shape: f32[1,16], index: 7, kind: input, shape index: {}]
  %s8 = inlined_call_operand.vmem [shape: f32[16,256], index: 8, kind: input, shape index: {}]
  %s9 = inlined_call_operand.vmem [shape: f32[1,256], index: 9, kind: input, shape index: {}]
  %s10 = inlined_call_operand.vmem [shape: f32[256,64], index: 10, kind: input, shape index: {}]
  %s11 = inlined_call_operand.vmem [shape: f32[1,64], index: 11, kind: input, shape index: {}]
  %s12 = inlined_call_operand.hbm [shape: f32[8,64], index: 12, kind: output, shape index: {0}]
  %s13 = inlined_call_operand.hbm [shape: f32[8,16], index: 13, kind: output, shape index: {1}]
  %s14 = inlined_call_operand.hbm [shape: f32[8,16], index: 14, kind: output, shape index: {2}]
  %15 = xla_tuple %s12, %s13, %s14
  %s16 = sld [smem:[#allocation0]]
  $region74: #{vae_forward.1} parent=0
    _
  %s18 = ssub.s32 1, %s16
  %s19 = scalar_select 0, %s18, %s16
  $region1: #{vae_forward.1} parent=0
    #allocation2 [shape = 'u8[4096]{0}', space=vmem, size = 0x1000, scoped, tag = 'output window, operand 0, single buffered']
    #allocation3 [shape = 's32[1]{0}', space=sflag, size = 0x4, scoped, tag = 'scoped memory for vae_forward.1']
    #allocation4 [shape = 'u8[4096]{0}', space=vmem, size = 0x1000, scoped, tag = 'output window, operand 1, single buffered']
    #allocation5 [shape = 's32[1]{0}', space=sflag, size = 0x4, scoped, tag = 'scoped memory for vae_forward.1']
    #allocation6 [shape = 'u8[4096]{0}', space=vmem, size = 0x1000, scoped, tag = 'output window, operand 2, single buffered']
    %20 = vsyncpa [#allocation3], 0
    %21 = vsyncpa [#allocation5], 0
    // Predicated region
    $region2: #{vae_forward.1} parent=1 // pred_check
      _
    $region3: #{vae_forward.1} parent=1 // pred_check_branch
      %23 = sbr.rel (0) target = $region5
    $region4: #{vae_forward.1} parent=1 // pred_region
      _
    $region5: #{vae_forward.1} parent=1 // pred_fallthru
      _
    // Predicated region
    $region6: #{vae_forward.1} parent=1 // pred_check
      _
    $region7: #{vae_forward.1} parent=1 // pred_check_branch
      %25 = sbr.rel (0) target = $region9
    $region8: #{vae_forward.1} parent=1 // pred_region
      _
    $region9: #{vae_forward.1} parent=1 // pred_fallthru
      _
    // Predicated region
    $region10: #{vae_forward.1} parent=1 // pred_check
      _
    $region11: #{vae_forward.1} parent=1 // pred_check_branch
      %27 = sbr.rel (0) target = $region13
    $region12: #{vae_forward.1} parent=1 // pred_region
      _
    $region13: #{vae_forward.1} parent=1 // pred_fallthru
      _
    // Predicated region
    $region14: #{vae_forward.1} parent=1 // pred_check
      _
    $region15: #{vae_forward.1} parent=1 // pred_check_branch
      %29 = sbr.rel (0) target = $region17
    $region16: #{vae_forward.1} parent=1 // pred_region
      _
    $region17: #{vae_forward.1} parent=1 // pred_fallthru
      _
    // Predicated region
    $region18: #{vae_forward.1} parent=1 // pred_check
      _
    $region19: #{vae_forward.1} parent=1 // pred_check_branch
      %31 = sbr.rel (0) target = $region21
    $region20: #{vae_forward.1} parent=1 // pred_region
      _
    $region21: #{vae_forward.1} parent=1 // pred_fallthru
      _
    // Predicated region
    $region22: #{vae_forward.1} parent=1 // pred_check
      _
    $region23: #{vae_forward.1} parent=1 // pred_check_branch
      %33 = sbr.rel (0) target = $region25
    $region24: #{vae_forward.1} parent=1 // pred_region
      _
    $region25: #{vae_forward.1} parent=1 // pred_fallthru
      _
    // Predicated region
    $region26: #{vae_forward.1} parent=1 // pred_check
      _
    $region27: #{vae_forward.1} parent=1 // pred_check_branch
      %35 = sbr.rel (0) target = $region29
    $region28: #{vae_forward.1} parent=1 // pred_region
      _
    $region29: #{vae_forward.1} parent=1 // pred_fallthru
      _
    // Predicated region
    $region30: #{vae_forward.1} parent=1 // pred_check
      _
    $region31: #{vae_forward.1} parent=1 // pred_check_branch
      %37 = sbr.rel (0) target = $region33
    $region32: #{vae_forward.1} parent=1 // pred_region
      _
    $region33: #{vae_forward.1} parent=1 // pred_fallthru
      _
    // Predicated region
    $region34: #{vae_forward.1} parent=1 // pred_check
      _
    $region35: #{vae_forward.1} parent=1 // pred_check_branch
      %39 = sbr.rel (0) target = $region37
    $region36: #{vae_forward.1} parent=1 // pred_region
      _
    $region37: #{vae_forward.1} parent=1 // pred_fallthru
      _
    // Predicated region
    $region38: #{vae_forward.1} parent=1 // pred_check
      _
    $region39: #{vae_forward.1} parent=1 // pred_check_branch
      %41 = sbr.rel (0) target = $region41
    $region40: #{vae_forward.1} parent=1 // pred_region
      _
    $region41: #{vae_forward.1} parent=1 // pred_fallthru
      _
    // Predicated region
    $region42: #{vae_forward.1} parent=1 // pred_check
      _
    $region43: #{vae_forward.1} parent=1 // pred_check_branch
      %43 = sbr.rel (0) target = $region45
    $region44: #{vae_forward.1} parent=1 // pred_region
      _
    $region45: #{vae_forward.1} parent=1 // pred_fallthru
      _
    // Predicated region
    $region46: #{vae_forward.1} parent=1 // pred_check
      _
    $region47: #{vae_forward.1} parent=1 // pred_check_branch
      %45 = sbr.rel (0) target = $region49
    $region48: #{vae_forward.1} parent=1 // pred_region
      _
    $region49: #{vae_forward.1} parent=1 // pred_fallthru
      _
    %v46 = vld [vmem:[%s0] sm:$0xff]
    %v47 = vld [vmem:[%s2] sm:$0xff]
    %v48 = vld [vmem:[%s2 + $0x8] sm:$0xff]
    %v49 = vld [vmem:[%s2 + $0x10] sm:$0xff]
    %v50 = vld [vmem:[%s2 + $0x18] sm:$0xff]
    %v51 = vld [vmem:[%s2 + $0x20] sm:$0xff]
    %v52 = vld [vmem:[%s2 + $0x28] sm:$0xff]
    %v53 = vld [vmem:[%s2 + $0x30] sm:$0xff]
    %v54 = vld [vmem:[%s2 + $0x38] sm:$0xff]
    %v55 = vld [vmem:[%s2 + $0x40] sm:$0xff]
    %v56 = vld [vmem:[%s2 + $0x48] sm:$0xff]
    %v57 = vld [vmem:[%s2 + $0x50] sm:$0xff]
    %v58 = vld [vmem:[%s2 + $0x58] sm:$0xff]
    %v59 = vld [vmem:[%s2 + $0x60] sm:$0xff]
    %v60 = vld [vmem:[%s2 + $0x68] sm:$0xff]
    %v61 = vld [vmem:[%s2 + $0x70] sm:$0xff]
    %v62 = vld [vmem:[%s2 + $0x78] sm:$0xff]
    %v63 = vld [vmem:[%s3] sm:$0x3]
    %v65 = vperm.slane %v63, 0
    %v66 = vperm.slane %v63, 1
    %vm69 = vcmask 523264
    %v71 = vsel %vm69, %v46, 0
    %73 = vmatpush.msra.mxu0 0.0
    %74 = vmatpush.msra.mxu0 0.0
    %75 = vmatpush.msra.mxu0 0.0
    %76 = vmatpush.msra.mxu0 0.0
    %77 = vmatpush.msra.mxu0 0.0
    %78 = vmatpush.msra.mxu0 0.0
    %79 = vmatpush.msra.mxu0 0.0
    %80 = vmatpush.msra.mxu0 0.0
    %81 = vmatpush.msra.mxu0 %v61
    %82 = vmatpush.msra.mxu0 %v59
    %83 = vmatpush.msra.mxu0 %v57
    %84 = vmatpush.msra.mxu0 %v55
    %85 = vmatpush.msra.mxu0 %v53
    %86 = vmatpush.msra.mxu0 %v51
    %87 = vmatpush.msra.mxu0 %v49
    %88 = vmatpush.msra.mxu0 %v47
    %89 = vmatmul.f32.gmra.mxu0 %v71
    %v90 = vpop.f32.mrf.mxu0
    %v91 = vadd.f32 %v65, %v90
    %92 = vdwg.mxu0
    %93 = vmatpush.msra.mxu0 0.0
    %94 = vmatpush.msra.mxu0 0.0
    %95 = vmatpush.msra.mxu0 0.0
    %96 = vmatpush.msra.mxu0 0.0
    %97 = vmatpush.msra.mxu0 0.0
    %98 = vmatpush.msra.mxu0 0.0
    %99 = vmatpush.msra.mxu0 0.0
    %100 = vmatpush.msra.mxu0 0.0
    %101 = vmatpush.msra.mxu0 %v62
    %102 = vmatpush.msra.mxu0 %v60
    %103 = vmatpush.msra.mxu0 %v58
    %104 = vmatpush.msra.mxu0 %v56
    %105 = vmatpush.msra.mxu0 %v54
    %106 = vmatpush.msra.mxu0 %v52
    %107 = vmatpush.msra.mxu0 %v50
    %108 = vmatpush.msra.mxu0 %v48
    %109 = vmatmul.f32.gmra.mxu0 %v71
    %v110 = vpop.f32.mrf.mxu0
    %v111 = vadd.f32 %v66, %v110
    %112 = vdwg.mxu0
    %v113 = vmax.f32 %v91, 0.0
    %v114 = vmax.f32 %v111, 0.0
    %v115 = vld [vmem:[%s4] sm:$0xff]
    %v116 = vld [vmem:[%s4 + $0x8] sm:$0xff]
    %v117 = vld [vmem:[%s4 + $0x10] sm:$0xff]
    %v118 = vld [vmem:[%s4 + $0x18] sm:$0xff]
    %v119 = vld [vmem:[%s4 + $0x20] sm:$0xff]
    %v120 = vld [vmem:[%s4 + $0x28] sm:$0xff]
    %v121 = vld [vmem:[%s4 + $0x30] sm:$0xff]
    %v122 = vld [vmem:[%s4 + $0x38] sm:$0xff]
    %v123 = vld [vmem:[%s4 + $0x40] sm:$0xff]
    %v124 = vld [vmem:[%s4 + $0x48] sm:$0xff]
    %v125 = vld [vmem:[%s4 + $0x50] sm:$0xff]
    %v126 = vld [vmem:[%s4 + $0x58] sm:$0xff]
    %v127 = vld [vmem:[%s4 + $0x60] sm:$0xff]
    %v128 = vld [vmem:[%s4 + $0x68] sm:$0xff]
    %v129 = vld [vmem:[%s4 + $0x70] sm:$0xff]
    %v130 = vld [vmem:[%s4 + $0x78] sm:$0xff]
    %v131 = vld [vmem:[%s4 + $0x80] sm:$0xff]
    %v132 = vld [vmem:[%s4 + $0x88] sm:$0xff]
    %v133 = vld [vmem:[%s4 + $0x90] sm:$0xff]
    %v134 = vld [vmem:[%s4 + $0x98] sm:$0xff]
    %v135 = vld [vmem:[%s4 + $0xa0] sm:$0xff]
    %v136 = vld [vmem:[%s4 + $0xa8] sm:$0xff]
    %v137 = vld [vmem:[%s4 + $0xb0] sm:$0xff]
    %v138 = vld [vmem:[%s4 + $0xb8] sm:$0xff]
    %v139 = vld [vmem:[%s4 + $0xc0] sm:$0xff]
    %v140 = vld [vmem:[%s4 + $0xc8] sm:$0xff]
    %v141 = vld [vmem:[%s4 + $0xd0] sm:$0xff]
    %v142 = vld [vmem:[%s4 + $0xd8] sm:$0xff]
    %v143 = vld [vmem:[%s4 + $0xe0] sm:$0xff]
    %v144 = vld [vmem:[%s4 + $0xe8] sm:$0xff]
    %v145 = vld [vmem:[%s4 + $0xf0] sm:$0xff]
    %v146 = vld [vmem:[%s4 + $0xf8] sm:$0xff]
    %v147 = vld [vmem:[%s5] sm:$0x1]
    %v149 = vperm.slane %v147, 0
    %151 = vmatpush.msra.mxu0 %v130
    %152 = vmatpush.msra.mxu0 %v129
    %153 = vmatpush.msra.mxu0 %v128
    %154 = vmatpush.msra.mxu0 %v127
    %155 = vmatpush.msra.mxu0 %v126
    %156 = vmatpush.msra.mxu0 %v125
    %157 = vmatpush.msra.mxu0 %v124
    %158 = vmatpush.msra.mxu0 %v123
    %159 = vmatpush.msra.mxu0 %v122
    %160 = vmatpush.msra.mxu0 %v121
    %161 = vmatpush.msra.mxu0 %v120
    %162 = vmatpush.msra.mxu0 %v119
    %163 = vmatpush.msra.mxu0 %v118
    %164 = vmatpush.msra.mxu0 %v117
    %165 = vmatpush.msra.mxu0 %v116
    %166 = vmatpush.msra.mxu0 %v115
    %167 = vmatmul.f32.gmra.mxu0 %v113
    %v168 = vpop.f32.mrf.mxu0
    %v169 = vadd.f32 %v149, %v168
    %170 = vdwg.mxu0
    %171 = vmatpush.msra.mxu0 %v146
    %172 = vmatpush.msra.mxu0 %v145
    %173 = vmatpush.msra.mxu0 %v144
    %174 = vmatpush.msra.mxu0 %v143
    %175 = vmatpush.msra.mxu0 %v142
    %176 = vmatpush.msra.mxu0 %v141
    %177 = vmatpush.msra.mxu0 %v140
    %178 = vmatpush.msra.mxu0 %v139
    %179 = vmatpush.msra.mxu0 %v138
    %180 = vmatpush.msra.mxu0 %v137
    %181 = vmatpush.msra.mxu0 %v136
    %182 = vmatpush.msra.mxu0 %v135
    %183 = vmatpush.msra.mxu0 %v134
    %184 = vmatpush.msra.mxu0 %v133
    %185 = vmatpush.msra.mxu0 %v132
    %186 = vmatpush.msra.mxu0 %v131
    %187 = vmatmul.f32.gmra.mxu0 %v114
    %v188 = vpop.f32.mrf.mxu0
    %v189 = vadd.f32 %v169, %v188
    %190 = vdwg.mxu0
    %v191 = vld [vmem:[%s6] sm:$0xff]
    %v192 = vld [vmem:[%s6 + $0x8] sm:$0xff]
    %v193 = vld [vmem:[%s6 + $0x10] sm:$0xff]
    %v194 = vld [vmem:[%s6 + $0x18] sm:$0xff]
    %v195 = vld [vmem:[%s6 + $0x20] sm:$0xff]
    %v196 = vld [vmem:[%s6 + $0x28] sm:$0xff]
    %v197 = vld [vmem:[%s6 + $0x30] sm:$0xff]
    %v198 = vld [vmem:[%s6 + $0x38] sm:$0xff]
    %v199 = vld [vmem:[%s6 + $0x40] sm:$0xff]
    %v200 = vld [vmem:[%s6 + $0x48] sm:$0xff]
    %v201 = vld [vmem:[%s6 + $0x50] sm:$0xff]
    %v202 = vld [vmem:[%s6 + $0x58] sm:$0xff]
    %v203 = vld [vmem:[%s6 + $0x60] sm:$0xff]
    %v204 = vld [vmem:[%s6 + $0x68] sm:$0xff]
    %v205 = vld [vmem:[%s6 + $0x70] sm:$0xff]
    %v206 = vld [vmem:[%s6 + $0x78] sm:$0xff]
    %v207 = vld [vmem:[%s6 + $0x80] sm:$0xff]
    %v208 = vld [vmem:[%s6 + $0x88] sm:$0xff]
    %v209 = vld [vmem:[%s6 + $0x90] sm:$0xff]
    %v210 = vld [vmem:[%s6 + $0x98] sm:$0xff]
    %v211 = vld [vmem:[%s6 + $0xa0] sm:$0xff]
    %v212 = vld [vmem:[%s6 + $0xa8] sm:$0xff]
    %v213 = vld [vmem:[%s6 + $0xb0] sm:$0xff]
    %v214 = vld [vmem:[%s6 + $0xb8] sm:$0xff]
    %v215 = vld [vmem:[%s6 + $0xc0] sm:$0xff]
    %v216 = vld [vmem:[%s6 + $0xc8] sm:$0xff]
    %v217 = vld [vmem:[%s6 + $0xd0] sm:$0xff]
    %v218 = vld [vmem:[%s6 + $0xd8] sm:$0xff]
    %v219 = vld [vmem:[%s6 + $0xe0] sm:$0xff]
    %v220 = vld [vmem:[%s6 + $0xe8] sm:$0xff]
    %v221 = vld [vmem:[%s6 + $0xf0] sm:$0xff]
    %v222 = vld [vmem:[%s6 + $0xf8] sm:$0xff]
    %v223 = vld [vmem:[%s7] sm:$0x1]
    %v225 = vperm.slane %v223, 0
    %227 = vmatpush.msra.mxu0 %v206
    %228 = vmatpush.msra.mxu0 %v205
    %229 = vmatpush.msra.mxu0 %v204
    %230 = vmatpush.msra.mxu0 %v203
    %231 = vmatpush.msra.mxu0 %v202
    %232 = vmatpush.msra.mxu0 %v201
    %233 = vmatpush.msra.mxu0 %v200
    %234 = vmatpush.msra.mxu0 %v199
    %235 = vmatpush.msra.mxu0 %v198
    %236 = vmatpush.msra.mxu0 %v197
    %237 = vmatpush.msra.mxu0 %v196
    %238 = vmatpush.msra.mxu0 %v195
    %239 = vmatpush.msra.mxu0 %v194
    %240 = vmatpush.msra.mxu0 %v193
    %241 = vmatpush.msra.mxu0 %v192
    %242 = vmatpush.msra.mxu0 %v191
    %243 = vmatmul.f32.gmra.mxu0 %v113
    %v244 = vpop.f32.mrf.mxu0
    %v245 = vadd.f32 %v225, %v244
    %246 = vdwg.mxu0
    %247 = vmatpush.msra.mxu0 %v222
    %248 = vmatpush.msra.mxu0 %v221
    %249 = vmatpush.msra.mxu0 %v220
    %250 = vmatpush.msra.mxu0 %v219
    %251 = vmatpush.msra.mxu0 %v218
    %252 = vmatpush.msra.mxu0 %v217
    %253 = vmatpush.msra.mxu0 %v216
    %254 = vmatpush.msra.mxu0 %v215
    %255 = vmatpush.msra.mxu0 %v214
    %256 = vmatpush.msra.mxu0 %v213
    %257 = vmatpush.msra.mxu0 %v212
    %258 = vmatpush.msra.mxu0 %v211
    %259 = vmatpush.msra.mxu0 %v210
    %260 = vmatpush.msra.mxu0 %v209
    %261 = vmatpush.msra.mxu0 %v208
    %262 = vmatpush.msra.mxu0 %v207
    %263 = vmatmul.f32.gmra.mxu0 %v114
    %v264 = vpop.f32.mrf.mxu0
    %v265 = vadd.f32 %v245, %v264
    %266 = vdwg.mxu0
    %v267 = vld [vmem:[%s1] sm:$0xff]
    %v268 = vmul.f32 %v265, 0.5
    %v269 = vmul.f32 %v268, 1.442695
    %v270 = vpow.pop %v269
    %v271 = vmul.f32 %v267, %v270
    %v272 = vadd.f32 %v189, %v271
    %v273 = vld [vmem:[%s8] sm:$0xff]
    %v274 = vld [vmem:[%s8 + $0x8] sm:$0xff]
    %v275 = vld [vmem:[%s8 + $0x10] sm:$0xff]
    %v276 = vld [vmem:[%s8 + $0x18] sm:$0xff]
    %v277 = vld [vmem:[%s9] sm:$0x3]
    %v279 = vperm.slane %v277, 0
    %v280 = vperm.slane %v277, 1
    %vm283 = vcmask 130048
    %v285 = vsel %vm283, %v272, 0
    %287 = vmatpush.msra.mxu0 0.0
    %288 = vmatpush.msra.mxu0 0.0
    %289 = vmatpush.msra.mxu0 0.0
    %290 = vmatpush.msra.mxu0 0.0
    %291 = vmatpush.msra.mxu0 0.0
    %292 = vmatpush.msra.mxu0 0.0
    %293 = vmatpush.msra.mxu0 0.0
    %294 = vmatpush.msra.mxu0 0.0
    %295 = vmatpush.msra.mxu0 0.0
    %296 = vmatpush.msra.mxu0 0.0
    %297 = vmatpush.msra.mxu0 0.0
    %298 = vmatpush.msra.mxu0 0.0
    %299 = vmatpush.msra.mxu0 0.0
    %300 = vmatpush.msra.mxu0 0.0
    %301 = vmatpush.msra.mxu0 %v275
    %302 = vmatpush.msra.mxu0 %v273
    %303 = vmatmul.f32.gmra.mxu0 %v285
    %v304 = vpop.f32.mrf.mxu0
    %v305 = vadd.f32 %v279, %v304
    %306 = vdwg.mxu0
    %307 = vmatpush.msra.mxu0 0.0
    %308 = vmatpush.msra.mxu0 0.0
    %309 = vmatpush.msra.mxu0 0.0
    %310 = vmatpush.msra.mxu0 0.0
    %311 = vmatpush.msra.mxu0 0.0
    %312 = vmatpush.msra.mxu0 0.0
    %313 = vmatpush.msra.mxu0 0.0
    %314 = vmatpush.msra.mxu0 0.0
    %315 = vmatpush.msra.mxu0 0.0
    %316 = vmatpush.msra.mxu0 0.0
    %317 = vmatpush.msra.mxu0 0.0
    %318 = vmatpush.msra.mxu0 0.0
    %319 = vmatpush.msra.mxu0 0.0
    %320 = vmatpush.msra.mxu0 0.0
    %321 = vmatpush.msra.mxu0 %v276
    %322 = vmatpush.msra.mxu0 %v274
    %323 = vmatmul.f32.gmra.mxu0 %v285
    %v324 = vpop.f32.mrf.mxu0
    %v325 = vadd.f32 %v280, %v324
    %326 = vdwg.mxu0
    %v327 = vmax.f32 %v305, 0.0
    %v328 = vmax.f32 %v325, 0.0
    %v329 = vld [vmem:[%s10] sm:$0xff]
    %v330 = vld [vmem:[%s10 + $0x8] sm:$0xff]
    %v331 = vld [vmem:[%s10 + $0x10] sm:$0xff]
    %v332 = vld [vmem:[%s10 + $0x18] sm:$0xff]
    %v333 = vld [vmem:[%s10 + $0x20] sm:$0xff]
    %v334 = vld [vmem:[%s10 + $0x28] sm:$0xff]
    %v335 = vld [vmem:[%s10 + $0x30] sm:$0xff]
    %v336 = vld [vmem:[%s10 + $0x38] sm:$0xff]
    %v337 = vld [vmem:[%s10 + $0x40] sm:$0xff]
    %v338 = vld [vmem:[%s10 + $0x48] sm:$0xff]
    %v339 = vld [vmem:[%s10 + $0x50] sm:$0xff]
    %v340 = vld [vmem:[%s10 + $0x58] sm:$0xff]
    %v341 = vld [vmem:[%s10 + $0x60] sm:$0xff]
    %v342 = vld [vmem:[%s10 + $0x68] sm:$0xff]
    %v343 = vld [vmem:[%s10 + $0x70] sm:$0xff]
    %v344 = vld [vmem:[%s10 + $0x78] sm:$0xff]
    %v345 = vld [vmem:[%s10 + $0x80] sm:$0xff]
    %v346 = vld [vmem:[%s10 + $0x88] sm:$0xff]
    %v347 = vld [vmem:[%s10 + $0x90] sm:$0xff]
    %v348 = vld [vmem:[%s10 + $0x98] sm:$0xff]
    %v349 = vld [vmem:[%s10 + $0xa0] sm:$0xff]
    %v350 = vld [vmem:[%s10 + $0xa8] sm:$0xff]
    %v351 = vld [vmem:[%s10 + $0xb0] sm:$0xff]
    %v352 = vld [vmem:[%s10 + $0xb8] sm:$0xff]
    %v353 = vld [vmem:[%s10 + $0xc0] sm:$0xff]
    %v354 = vld [vmem:[%s10 + $0xc8] sm:$0xff]
    %v355 = vld [vmem:[%s10 + $0xd0] sm:$0xff]
    %v356 = vld [vmem:[%s10 + $0xd8] sm:$0xff]
    %v357 = vld [vmem:[%s10 + $0xe0] sm:$0xff]
    %v358 = vld [vmem:[%s10 + $0xe8] sm:$0xff]
    %v359 = vld [vmem:[%s10 + $0xf0] sm:$0xff]
    %v360 = vld [vmem:[%s10 + $0xf8] sm:$0xff]
    %v361 = vld [vmem:[%s11] sm:$0x1]
    %v363 = vperm.slane %v361, 0
    %365 = vmatpush.msra.mxu0 %v344
    %366 = vmatpush.msra.mxu0 %v343
    %367 = vmatpush.msra.mxu0 %v342
    %368 = vmatpush.msra.mxu0 %v341
    %369 = vmatpush.msra.mxu0 %v340
    %370 = vmatpush.msra.mxu0 %v339
    %371 = vmatpush.msra.mxu0 %v338
    %372 = vmatpush.msra.mxu0 %v337
    %373 = vmatpush.msra.mxu0 %v336
    %374 = vmatpush.msra.mxu0 %v335
    %375 = vmatpush.msra.mxu0 %v334
    %376 = vmatpush.msra.mxu0 %v333
    %377 = vmatpush.msra.mxu0 %v332
    %378 = vmatpush.msra.mxu0 %v331
    %379 = vmatpush.msra.mxu0 %v330
    %380 = vmatpush.msra.mxu0 %v329
    %381 = vmatmul.f32.gmra.mxu0 %v327
    %v382 = vpop.f32.mrf.mxu0
    %v383 = vadd.f32 %v363, %v382
    %384 = vdwg.mxu0
    %385 = vmatpush.msra.mxu0 %v360
    %386 = vmatpush.msra.mxu0 %v359
    %387 = vmatpush.msra.mxu0 %v358
    %388 = vmatpush.msra.mxu0 %v357
    %389 = vmatpush.msra.mxu0 %v356
    %390 = vmatpush.msra.mxu0 %v355
    %391 = vmatpush.msra.mxu0 %v354
    %392 = vmatpush.msra.mxu0 %v353
    %393 = vmatpush.msra.mxu0 %v352
    %394 = vmatpush.msra.mxu0 %v351
    %395 = vmatpush.msra.mxu0 %v350
    %396 = vmatpush.msra.mxu0 %v349
    %397 = vmatpush.msra.mxu0 %v348
    %398 = vmatpush.msra.mxu0 %v347
    %399 = vmatpush.msra.mxu0 %v346
    %400 = vmatpush.msra.mxu0 %v345
    %401 = vmatmul.f32.gmra.mxu0 %v328
    %v402 = vpop.f32.mrf.mxu0
    %v403 = vadd.f32 %v383, %v402
    %404 = vdwg.mxu0
    %v405 = vxor.u32 %v403, 2147483648
    %v406 = vmul.f32 %v405, 1.442695
    %v407 = vpow.pop %v406
    %v408 = vadd.f32 %v407, 1.0
    %v409 = vrcp.pop %v408
    %v410 = vmul.f32 %v408, %v409
    %v411 = vsub.f32 1.0, %v410
    %v412 = vmul.f32 %v409, %v411
    %v413 = vadd.f32 %v409, %v412
    %vm414 = vweird.f32 %v408
    %vm415 = vweird.f32 %v409
    %vm416 = vmor %vm414, %vm415
    %v417 = vsel %vm416, %v409, %v413
    %v418 = vand.u32 2147483647, %v408
    %vm419 = vcmp.eq.f32.partialorder %v418, 8.507059e+37
    %v420 = vand.u32 %v408, 2147483648
    %v421 = vor.u32 1.1754944e-38, %v420
    %v422 = vsel %vm419, %v421, %v417
    %v423 = vmul.f32 1.0, %v422
    %424 = vst.msk [vmem:[#allocation2] sm:$0xff] %vm69, %v423
    %425 = vst.msk [vmem:[#allocation4] sm:$0xff] %vm283, %v189
    %426 = vst.msk [vmem:[#allocation6] sm:$0xff] %vm283, %v265
    // Predicated region
    $region50: #{vae_forward.1} parent=1 // pred_check
      _
    $region51: #{vae_forward.1} parent=1 // pred_check_branch
      %428 = sbr.rel (0) target = $region53
    $region52: #{vae_forward.1} parent=1 // pred_region
      %430 = vsyncadd [#allocation3], 0
      %s432 = sshll.u32 [#allocation2], 4
      %s433 = int_to_ptr.vmem [resolvable:$true] %s432
      %s434 = sshll.u32 %s12, 4
      %s435 = int_to_ptr.hbm [resolvable:$true] %s434
      %437 = dma.vmem_to_hbm [thread:$0]  %s433, 128, %s435, [#allocation3]
    $region53: #{vae_forward.1} parent=1 // pred_fallthru
      _
    // Predicated region
    $region54: #{vae_forward.1} parent=1 // pred_check
      _
    $region55: #{vae_forward.1} parent=1 // pred_check_branch
      %439 = sbr.rel (0) target = $region57
    $region56: #{vae_forward.1} parent=1 // pred_region
      %441 = vsyncadd [#allocation5], 0
      %s443 = sshll.u32 [#allocation4], 4
      %s444 = int_to_ptr.vmem [resolvable:$true] %s443
      %s445 = sshll.u32 %s13, 4
      %s446 = int_to_ptr.hbm [resolvable:$true] %s445
      %448 = dma.vmem_to_hbm [thread:$0]  %s444, 128, %s446, [#allocation5]
    $region57: #{vae_forward.1} parent=1 // pred_fallthru
      _
    // Predicated region
    $region58: #{vae_forward.1} parent=1 // pred_check
      _
    $region59: #{vae_forward.1} parent=1 // pred_check_branch
      %450 = sbr.rel (0) target = $region61
    $region60: #{vae_forward.1} parent=1 // pred_region
      %452 = vsyncadd [#allocation5], 0
      %s454 = sshll.u32 [#allocation6], 4
      %s455 = int_to_ptr.vmem [resolvable:$true] %s454
      %s456 = sshll.u32 %s14, 4
      %s457 = int_to_ptr.hbm [resolvable:$true] %s456
      %459 = dma.vmem_to_hbm [thread:$0]  %s455, 128, %s457, [#allocation5]
    $region61: #{vae_forward.1} parent=1 // pred_fallthru
      _
    // Predicated region
    $region62: #{vae_forward.1} parent=1 // pred_check
      _
    $region63: #{vae_forward.1} parent=1 // pred_check_branch
      %461 = sbr.rel (0) target = $region65
    $region64: #{vae_forward.1} parent=1 // pred_region
      %463 = dma.done [#allocation3], 128
    $region65: #{vae_forward.1} parent=1 // pred_fallthru
      _
    // Predicated region
    $region66: #{vae_forward.1} parent=1 // pred_check
      _
    $region67: #{vae_forward.1} parent=1 // pred_check_branch
      %465 = sbr.rel (0) target = $region69
    $region68: #{vae_forward.1} parent=1 // pred_region
      %467 = dma.done [#allocation5], 128
    $region69: #{vae_forward.1} parent=1 // pred_fallthru
      _
    // Predicated region
    $region70: #{vae_forward.1} parent=1 // pred_check
      _
    $region71: #{vae_forward.1} parent=1 // pred_check_branch
      %469 = sbr.rel (0) target = $region73
    $region72: #{vae_forward.1} parent=1 // pred_region
      %471 = dma.done [#allocation5], 128
    $region73: #{vae_forward.1} parent=1 // pred_fallthru
      _
    %472 = vsyncpa [#allocation3], 1
    %473 = vsyncpa [#allocation5], 1

</llo_original>
